<compile_context>
chip_gen: v5e
topology: v5e:2x2
jax: 0.10.0
libtpu: 0.0.40
codegen_flags: <defaults>
</compile_context>

<pallas_src>
import jax
import jax.numpy as jnp
from jax.experimental import pallas as pl
from jax.experimental.pallas import tpu as pltpu

LANE = 128                      # vreg lane width
SUB = 8                         # f32 sublane count (accumulator granularity)
TARGET_BYTES = 2 * 1024 * 1024  # per-input, per-pipeline-buffer tile size


def _num_tensorcores():
    """2 on v7x (two TensorCores per device), 1 on v5e/v6e. Conservative default 1."""
    try:
        kind = jax.devices()[0].device_kind.lower()
    except Exception:
        return 1
    return 2 if ("v7" in kind or "7x" in kind) else 1


def _make_kernel(tile_rows, steps, rows_valid, any_partial, binary_targets):
    def kernel(x_ref, y_ref, out_ref):
        # out_ref block: (1, 3, 8, 128) f32 accumulators, resident in VMEM
        # across the inner ("arbitrary") grid axis.
        #   slot 0: sum(x*y)    slot 1: sum(x + y)    slot 2: sum(log-likelihood)
        i = pl.program_id(1)

        @pl.when(i == 0)
        def _init():
            out_ref[...] = jnp.zeros_like(out_ref)

        x = x_ref[...].astype(jnp.float32)
        y = y_ref[...].astype(jnp.float32)

        def fold(v):
            # (tile_rows, 128) -> (8, 128) with vreg-aligned vector adds only
            # (no cross-lane / cross-sublane work in the hot loop).
            return jnp.sum(v.reshape(-1, SUB, LANE), axis=0)

        def accumulate(xv, yv):
            if binary_targets:
                # Hard {0,1} targets: single log per element.
                psel = jnp.where(yv >= 0.5, xv, 1.0 - xv)
                loglik = jnp.maximum(jnp.log(psel), -100.0)
            else:
                # Exact PyTorch BCE semantics (log terms clamped at -100),
                # written as log_1mp + y*(log_p - log_1mp) to save a multiply.
                log_p = jnp.maximum(jnp.log(xv), -100.0)
                log_1mp = jnp.maximum(jnp.log(1.0 - xv), -100.0)
                loglik = log_1mp + yv * (log_p - log_1mp)
            out_ref[0, 0] = out_ref[0, 0] + fold(xv * yv)
            out_ref[0, 1] = out_ref[0, 1] + fold(xv + yv)
            out_ref[0, 2] = out_ref[0, 2] + fold(loglik)

        if any_partial:
            # Only the ragged last block(s) take the masked path; the hot
            # path below is mask-free.
            p = pl.program_id(0)
            start = (p * steps + i) * tile_rows
            is_partial = start + tile_rows > rows_valid

            @pl.when(jnp.logical_not(is_partial))
            def _full():
                accumulate(x, y)

            @pl.when(is_partial)
            def _tail():
                row = start + jax.lax.broadcasted_iota(jnp.int32, (tile_rows, 1), 0)
                valid = row < rows_valid
                # Mask BEFORE the logs so garbage in the padded block region
                # cannot produce NaNs; bce(0,0)=0 with the -100 clamp.
                accumulate(jnp.where(valid, x, 0.0), jnp.where(valid, y, 0.0))
        else:
            accumulate(x, y)

    return kernel


def dice_bce_loss(inputs, targets, smooth=1.0, binary_targets=False):
    x = inputs.reshape(-1)
    y = targets.reshape(-1)
    n = x.shape[0]

    x_item = x.dtype.itemsize
    y_item = y.dtype.itemsize
    # dtype-aware sublane multiple for the block shape: 8 (f32), 16 (bf16), 32 (i8/fp8)
    sub_req = max(SUB, 32 // min(x_item, 4), 32 // min(y_item, 4))
    max_item = max(x_item, y_item)
    target_rows = max(sub_req, (TARGET_BYTES // (LANE * max_item)) // sub_req * sub_req)

    rows = -(-n // LANE)  # ceil(n / 128)

    if rows <= target_rows:
        # Small array: one full-array block (cheap to pad rows to the sublane
        # multiple since the array itself is < ~2 MiB). No masking needed.
        rows_pad = -(-rows // sub_req) * sub_req
        tile_rows = rows_pad
        splits, steps, real_blocks = 1, 1, 1
        any_partial = False
    else:
        # Large array: fixed ~2 MiB blocks, ragged last block masked in-kernel
        # (no O(n) pad copy of the inputs).
        rows_pad = rows
        tile_rows = target_rows
        real_blocks = -(-rows_pad // tile_rows)
        splits = min(_num_tensorcores(), real_blocks)
        steps = -(-real_blocks // splits)
        any_partial = (rows_pad % tile_rows != 0) or (splits * steps != real_blocks)

    n_padded = rows_pad * LANE
    if n_padded != n:
        # TODO(synk): this O(n) pad copy only triggers when n is not a multiple
        # of 128 (large arrays) or 128*sub_req (small arrays); a fully pad-free
        # path would need manual 1D DMA of the sub-128 ragged tail.
        x = jnp.pad(x, (0, n_padded - n))
        y = jnp.pad(y, (0, n_padded - n))

    x2 = x.reshape(rows_pad, LANE)
    y2 = y.reshape(rows_pad, LANE)

    need_clamp = (splits * steps != real_blocks)
    last_block = real_blocks - 1

    def in_map(p, i):
        b = p * steps + i
        if need_clamp:
            # Duplicated trailing blocks (uneven split) re-read the last real
            # block; the in-kernel row mask zeroes their contribution.
            b = jnp.minimum(b, last_block)
        return (b, 0)

    if splits > 1:
        dim_sem = (pltpu.CORE_PARALLEL, pltpu.ARBITRARY)   # one half per TC (v7x)
    else:
        dim_sem = ("arbitrary", "arbitrary")

    cost = pl.CostEstimate(
        flops=12 * n_padded,
        transcendentals=(1 if binary_targets else 2) * n_padded,
        bytes_accessed=n_padded * (x_item + y_item) + splits * 3 * SUB * LANE * 4,
    )

    partials = pl.pallas_call(
        _make_kernel(tile_rows, steps, rows_pad, any_partial, binary_targets),
        out_shape=jax.ShapeDtypeStruct((splits, 3, SUB, LANE), jnp.float32),
        grid=(splits, steps),
        in_specs=[
            pl.BlockSpec((tile_rows, LANE), in_map),
            pl.BlockSpec((tile_rows, LANE), in_map),
        ],
        out_specs=pl.BlockSpec((1, 3, SUB, LANE), lambda p, i: (p, 0, 0, 0)),
        compiler_params=pltpu.CompilerParams(
            dimension_semantics=dim_sem,
            vmem_limit_bytes=32 * 1024 * 1024,
        ),
        cost_estimate=cost,
    )(x2, y2)

    # Tiny final reduction (splits*3*8*128 floats) in plain JAX.
    sums = jnp.sum(partials, axis=(0, 2, 3))
    intersection = sums[0]          # sum(x * y)
    sum_x_plus_y = sums[1]          # sum(x) + sum(y)
    loglik = sums[2]                # sum(y*log x + (1-y)*log(1-x)), clamped
    dice_loss = 1.0 - (2.0 * intersection + smooth) / (sum_x_plus_y + smooth)
    bce = -loglik / n
    return bce + dice_loss


def _reference(inputs, targets, smooth=1.0):
    x = inputs.reshape(-1).astype(jnp.float32)
    y = targets.reshape(-1).astype(jnp.float32)
    intersection = jnp.sum(x * y)
    dice_loss = 1.0 - (2.0 * intersection + smooth) / (jnp.sum(x) + jnp.sum(y) + smooth)
    bce = jnp.mean(-(y * jnp.maximum(jnp.log(x), -100.0)
                     + (1.0 - y) * jnp.maximum(jnp.log(1.0 - x), -100.0)))
    return bce + dice_loss


if __name__ == "__main__":
    key = jax.random.PRNGKey(0)
    k1, k2 = jax.random.split(key)
    # inputs must already be probabilities in [0, 1] (BCE without logits,
    # matching torch.nn.functional.binary_cross_entropy).
    inputs = jax.nn.sigmoid(jax.random.normal(k1, (2, 4, 16, 16), jnp.float32))
    targets = (jax.random.uniform(k2, (2, 4, 16, 16)) > 0.5).astype(jnp.float32)

    loss = dice_bce_loss(inputs, targets, smooth=1.0)
    loss = jax.block_until_ready(loss)

    ref = _reference(inputs, targets, smooth=1.0)
    assert jnp.allclose(loss, ref, rtol=1e-5, atol=1e-5), (loss, ref)
    print("KERNEL_OK")
</pallas_src>

<mosaic_0001>
module attributes {stable_mosaic.version = 11 : i64} {
  func.func @kernel(%arg0: i32, %arg1: i32, %arg2: memref<16x128xf32, #tpu.memory_space<vmem>>, %arg3: memref<16x128xf32, #tpu.memory_space<vmem>>, %arg4: memref<1x3x8x128xf32, #tpu.memory_space<vmem>>) attributes {dimension_semantics = [#tpu.dimension_semantics<arbitrary>, #tpu.dimension_semantics<arbitrary>], iteration_bounds = array<i64: 1, 1>, scalar_prefetch = 0 : i64, scratch_operands = 0 : i64, tpu.core_type = #tpu.core_type<tc>, window_params = [{transform_indices = @transform_0, window_bounds = array<i64: 16, 128>}, {transform_indices = @transform_1, window_bounds = array<i64: 16, 128>}, {transform_indices = @transform_2, window_bounds = array<i64: 1, 3, 8, 128>}]} {
    %c0_i32 = arith.constant 0 : i32
    %0 = arith.cmpi eq, %arg1, %c0_i32 : i32
    %1 = arith.extui %0 : i1 to i32
    %c0_i32_0 = arith.constant 0 : i32
    %2 = arith.cmpi ne, %1, %c0_i32_0 : i32
    scf.if %2 {
      %cst_31 = arith.constant 0.000000e+00 : f32
      %42 = vector.broadcast %cst_31 : f32 to vector<1x3x8x128xf32>
      %c0_32 = arith.constant 0 : index
      %c0_33 = arith.constant 0 : index
      %c0_34 = arith.constant 0 : index
      %c0_35 = arith.constant 0 : index
      %43 = vector.load %arg4[%c0_32, %c0_33, %c0_34, %c0_35] : memref<1x3x8x128xf32, #tpu.memory_space<vmem>>, vector<1x3x8x128xf32>
      tpu.vector_store %arg4[%c0_32, %c0_33, %c0_34, %c0_35], %42 {strides = array<i32>} : memref<1x3x8x128xf32, #tpu.memory_space<vmem>>, vector<1x3x8x128xf32>,
    } else {
    }
    %c0 = arith.constant 0 : index
    %c0_1 = arith.constant 0 : index
    %3 = vector.load %arg2[%c0, %c0_1] : memref<16x128xf32, #tpu.memory_space<vmem>>, vector<16x128xf32>
    %c0_2 = arith.constant 0 : index
    %c0_3 = arith.constant 0 : index
    %4 = vector.load %arg3[%c0_2, %c0_3] : memref<16x128xf32, #tpu.memory_space<vmem>>, vector<16x128xf32>
    %5 = math.log %3 : vector<16x128xf32>
    %cst = arith.constant -1.000000e+02 : f32
    %6 = vector.broadcast %cst : f32 to vector<16x128xf32>
    %7 = arith.maximumf %5, %6 : vector<16x128xf32>
    %cst_4 = arith.constant 1.000000e+00 : f32
    %8 = vector.broadcast %cst_4 : f32 to vector<16x128xf32>
    %9 = arith.subf %8, %3 : vector<16x128xf32>
    %10 = math.log %9 : vector<16x128xf32>
    %cst_5 = arith.constant -1.000000e+02 : f32
    %11 = vector.broadcast %cst_5 : f32 to vector<16x128xf32>
    %12 = arith.maximumf %10, %11 : vector<16x128xf32>
    %13 = arith.subf %7, %12 : vector<16x128xf32>
    %14 = arith.mulf %4, %13 : vector<16x128xf32>
    %15 = arith.addf %12, %14 : vector<16x128xf32>
    %c0_6 = arith.constant 0 : index
    %c0_7 = arith.constant 0 : index
    %c0_8 = arith.constant 0 : index
    %c0_9 = arith.constant 0 : index
    %16 = vector.load %arg4[%c0_6, %c0_7, %c0_8, %c0_9] : memref<1x3x8x128xf32, #tpu.memory_space<vmem>>, vector<1x1x8x128xf32>
    %17 = vector.shape_cast %16 : vector<1x1x8x128xf32> to vector<8x128xf32>
    %18 = arith.mulf %3, %4 : vector<16x128xf32>
    %19 = vector.shape_cast %18 : vector<16x128xf32> to vector<2x8x128xf32>
    %cst_10 = arith.constant dense<0.000000e+00> : vector<8x128xf32>
    %20 = vector.multi_reduction <add>, %19, %cst_10 [0] : vector<2x8x128xf32> to vector<8x128xf32>
    %21 = arith.addf %17, %20 : vector<8x128xf32>
    %c0_11 = arith.constant 0 : index
    %c0_12 = arith.constant 0 : index
    %c0_13 = arith.constant 0 : index
    %c0_14 = arith.constant 0 : index
    %22 = vector.load %arg4[%c0_11, %c0_12, %c0_13, %c0_14] : memref<1x3x8x128xf32, #tpu.memory_space<vmem>>, vector<1x1x8x128xf32>
    %23 = vector.shape_cast %22 : vector<1x1x8x128xf32> to vector<8x128xf32>
    %24 = vector.shape_cast %21 : vector<8x128xf32> to vector<1x1x8x128xf32>
    tpu.vector_store %arg4[%c0_11, %c0_12, %c0_13, %c0_14], %24 {strides = array<i32>} : memref<1x3x8x128xf32, #tpu.memory_space<vmem>>, vector<1x1x8x128xf32>,
    %c0_15 = arith.constant 0 : index
    %c1 = arith.constant 1 : index
    %c0_16 = arith.constant 0 : index
    %c0_17 = arith.constant 0 : index
    %25 = vector.load %arg4[%c0_15, %c1, %c0_16, %c0_17] : memref<1x3x8x128xf32, #tpu.memory_space<vmem>>, vector<1x1x8x128xf32>
    %26 = vector.shape_cast %25 : vector<1x1x8x128xf32> to vector<8x128xf32>
    %27 = arith.addf %3, %4 : vector<16x128xf32>
    %28 = vector.shape_cast %27 : vector<16x128xf32> to vector<2x8x128xf32>
    %cst_18 = arith.constant dense<0.000000e+00> : vector<8x128xf32>
    %29 = vector.multi_reduction <add>, %28, %cst_18 [0] : vector<2x8x128xf32> to vector<8x128xf32>
    %30 = arith.addf %26, %29 : vector<8x128xf32>
    %c0_19 = arith.constant 0 : index
    %c1_20 = arith.constant 1 : index
    %c0_21 = arith.constant 0 : index
    %c0_22 = arith.constant 0 : index
    %31 = vector.load %arg4[%c0_19, %c1_20, %c0_21, %c0_22] : memref<1x3x8x128xf32, #tpu.memory_space<vmem>>, vector<1x1x8x128xf32>
    %32 = vector.shape_cast %31 : vector<1x1x8x128xf32> to vector<8x128xf32>
    %33 = vector.shape_cast %30 : vector<8x128xf32> to vector<1x1x8x128xf32>
    tpu.vector_store %arg4[%c0_19, %c1_20, %c0_21, %c0_22], %33 {strides = array<i32>} : memref<1x3x8x128xf32, #tpu.memory_space<vmem>>, vector<1x1x8x128xf32>,
    %c0_23 = arith.constant 0 : index
    %c2 = arith.constant 2 : index
    %c0_24 = arith.constant 0 : index
    %c0_25 = arith.constant 0 : index
    %34 = vector.load %arg4[%c0_23, %c2, %c0_24, %c0_25] : memref<1x3x8x128xf32, #tpu.memory_space<vmem>>, vector<1x1x8x128xf32>
    %35 = vector.shape_cast %34 : vector<1x1x8x128xf32> to vector<8x128xf32>
    %36 = vector.shape_cast %15 : vector<16x128xf32> to vector<2x8x128xf32>
    %cst_26 = arith.constant dense<0.000000e+00> : vector<8x128xf32>
    %37 = vector.multi_reduction <add>, %36, %cst_26 [0] : vector<2x8x128xf32> to vector<8x128xf32>
    %38 = arith.addf %35, %37 : vector<8x128xf32>
    %c0_27 = arith.constant 0 : index
    %c2_28 = arith.constant 2 : index
    %c0_29 = arith.constant 0 : index
    %c0_30 = arith.constant 0 : index
    %39 = vector.load %arg4[%c0_27, %c2_28, %c0_29, %c0_30] : memref<1x3x8x128xf32, #tpu.memory_space<vmem>>, vector<1x1x8x128xf32>
    %40 = vector.shape_cast %39 : vector<1x1x8x128xf32> to vector<8x128xf32>
    %41 = vector.shape_cast %38 : vector<8x128xf32> to vector<1x1x8x128xf32>
    tpu.vector_store %arg4[%c0_27, %c2_28, %c0_29, %c0_30], %41 {strides = array<i32>} : memref<1x3x8x128xf32, #tpu.memory_space<vmem>>, vector<1x1x8x128xf32>,
    return
  }
  func.func @transform_0(%arg0: i32, %arg1: i32) -> (i32, i32) {
    %c1_i32 = arith.constant 1 : i32
    %0 = arith.muli %arg0, %c1_i32 : i32
    %1 = arith.addi %0, %arg1 : i32
    %c0_i32 = arith.constant 0 : i32
    %c0_i32_0 = arith.constant 0 : i32
    return %1, %c0_i32 : i32, i32
  }
  func.func @transform_1(%arg0: i32, %arg1: i32) -> (i32, i32) {
    %c1_i32 = arith.constant 1 : i32
    %0 = arith.muli %arg0, %c1_i32 : i32
    %1 = arith.addi %0, %arg1 : i32
    %c0_i32 = arith.constant 0 : i32
    %c0_i32_0 = arith.constant 0 : i32
    return %1, %c0_i32 : i32, i32
  }
  func.func @transform_2(%arg0: i32, %arg1: i32) -> (i32, i32, i32, i32) {
    %c0_i32 = arith.constant 0 : i32
    %c0_i32_0 = arith.constant 0 : i32
    %c0_i32_1 = arith.constant 0 : i32
    %c0_i32_2 = arith.constant 0 : i32
    return %arg0, %c0_i32, %c0_i32_0, %c0_i32_1 : i32, i32, i32, i32
  }
}

</mosaic_0001>

<llo_original>
// kernel: tpu_custom_call.1
$region0: #{tpu_custom_call.1}
  #allocation0 [shape = 'u32[]', space=smem, size = 0x4, offset = 0x4, fixed_abs, tag = 'smem constant byte address 0x4 - core index']
  #allocation1 [shape = 'u32[72,128]{1,0:T(1,128)}', space=vmem, size = 0x9000, scoped, tag = 'internal scratch']
  %s0 = inlined_call_operand.hbm [shape: f32[16,128], index: 0, kind: input, shape index: {}]
  %s1 = inlined_call_operand.hbm [shape: f32[16,128], index: 1, kind: input, shape index: {}]
  %s2 = inlined_call_operand.hbm [shape: f32[1,3,8,128], index: 2, kind: output, shape index: {}]
  %s3 = sld [smem:[#allocation0]]
  $region30: #{tpu_custom_call.1} parent=0
    _
  %s5 = ssub.s32 1, %s3
  %s6 = scalar_select 0, %s5, %s3
  $region1: #{tpu_custom_call.1} parent=0
    #allocation2 [shape = 'u8[8192]{0}', space=vmem, size = 0x2000, scoped, tag = 'input window, operand 0, single buffered']
    #allocation3 [shape = 's32[1]{0}', space=sflag, size = 0x4, scoped, tag = 'scoped memory for tpu_custom_call.1']
    #allocation4 [shape = 's32[1]{0}', space=sflag, size = 0x4, scoped, tag = 'scoped memory for tpu_custom_call.1']
    #allocation5 [shape = 'u8[8192]{0}', space=vmem, size = 0x2000, scoped, tag = 'input window, operand 1, single buffered']
    #allocation6 [shape = 's32[1]{0}', space=sflag, size = 0x4, scoped, tag = 'scoped memory for tpu_custom_call.1']
    #allocation7 [shape = 'u8[12288]{0}', space=vmem, size = 0x3000, scoped, tag = 'output window, operand 0, single buffered']
    %7 = vsyncpa [#allocation3], 0
    %8 = vsyncpa [#allocation6], 0
    %9 = vsyncpa [#allocation4], 0
    // Predicated region
    $region2: #{tpu_custom_call.1} parent=1 // pred_check
      _
    $region3: #{tpu_custom_call.1} parent=1 // pred_check_branch
      %11 = sbr.rel (0) target = $region5
    $region4: #{tpu_custom_call.1} parent=1 // pred_region
      %s12 = sadd.s32 0, 0
      %s13 = smul.u32 2, %s12
      %15 = vsyncadd [#allocation3], 0
      %s16 = smul.addr %s13, 8
      %s17 = scalar_lea.hbm %s0, %s16
      %s18 = sshll.u32 %s17, 4
      %s19 = int_to_ptr.hbm [resolvable:$true] %s18
      %s20 = sshll.u32 [#allocation2], 4
      %s21 = int_to_ptr.vmem [resolvable:$true] %s20
      %26 = dma.hbm_to_vmem [thread:$0]  %s19, 256, %s21, [#allocation3], 128, 128, 8
    $region5: #{tpu_custom_call.1} parent=1 // pred_fallthru
      _
    // Predicated region
    $region6: #{tpu_custom_call.1} parent=1 // pred_check
      _
    $region7: #{tpu_custom_call.1} parent=1 // pred_check_branch
      %28 = sbr.rel (0) target = $region9
    $region8: #{tpu_custom_call.1} parent=1 // pred_region
      %s29 = sadd.s32 0, 0
      %s30 = smul.u32 2, %s29
      %32 = vsyncadd [#allocation6], 0
      %s33 = smul.addr %s30, 8
      %s34 = scalar_lea.hbm %s1, %s33
      %s35 = sshll.u32 %s34, 4
      %s36 = int_to_ptr.hbm [resolvable:$true] %s35
      %s37 = sshll.u32 [#allocation5], 4
      %s38 = int_to_ptr.vmem [resolvable:$true] %s37
      %43 = dma.hbm_to_vmem [thread:$0]  %s36, 256, %s38, [#allocation6], 128, 128, 8
    $region9: #{tpu_custom_call.1} parent=1 // pred_fallthru
      _
    // Predicated region
    $region10: #{tpu_custom_call.1} parent=1 // pred_check
      _
    $region11: #{tpu_custom_call.1} parent=1 // pred_check_branch
      %45 = sbr.rel (0) target = $region13
    $region12: #{tpu_custom_call.1} parent=1 // pred_region
      %47 = dma.done [#allocation3], 256
    $region13: #{tpu_custom_call.1} parent=1 // pred_fallthru
      _
    // Predicated region
    $region14: #{tpu_custom_call.1} parent=1 // pred_check
      _
    $region15: #{tpu_custom_call.1} parent=1 // pred_check_branch
      %49 = sbr.rel (0) target = $region17
    $region16: #{tpu_custom_call.1} parent=1 // pred_region
      %51 = dma.done [#allocation6], 256
    $region17: #{tpu_custom_call.1} parent=1 // pred_fallthru
      _
    %s52 = sadd.s32 0, 0
    %s53 = smul.u32 2, %s52
    %s54 = sadd.s32 0, 0
    %s55 = smul.u32 2, %s54
    %p56 = scmp.eq.s32.totalorder 0, 0
    // Predicated region
    $region18: #{tpu_custom_call.1} parent=1 // pred_check
      %p57 = pneg %p56
    $region19: #{tpu_custom_call.1} parent=1 // pred_check_branch
      %59 = sbr.rel (%p57) target = $region21
    $region20: #{tpu_custom_call.1} parent=1 // pred_region
      %60 = vst [vmem:[#allocation7] sm:$0xff] 0.0
      %61 = vst [vmem:[#allocation7 + $0x8] sm:$0xff] 0.0
      %62 = vst [vmem:[#allocation7 + $0x10] sm:$0xff] 0.0
    $region21: #{tpu_custom_call.1} parent=1 // pred_fallthru
      _
    %v63 = vld [vmem:[#allocation2] sm:$0xff]
    %v64 = vld [vmem:[#allocation2 + $0x8] sm:$0xff]
    %v65 = vld [vmem:[#allocation5] sm:$0xff]
    %v66 = vld [vmem:[#allocation5 + $0x8] sm:$0xff]
    %v67 = vlog2.pop %v63
    %v68 = vmul.f32 %v67, 0.6931472
    %v69 = vlog2.pop %v64
    %v70 = vmul.f32 %v69, 0.6931472
    %v71 = vmax.f32 %v68, -100.0
    %v72 = vmax.f32 %v70, -100.0
    %v73 = vsub.f32 1.0, %v63
    %v74 = vsub.f32 1.0, %v64
    %v75 = vlog2.pop %v73
    %v76 = vmul.f32 %v75, 0.6931472
    %v77 = vlog2.pop %v74
    %v78 = vmul.f32 %v77, 0.6931472
    %v79 = vmax.f32 %v76, -100.0
    %v80 = vmax.f32 %v78, -100.0
    %v81 = vsub.f32 %v71, %v79
    %v82 = vsub.f32 %v72, %v80
    %v83 = vmul.f32 %v65, %v81
    %v84 = vmul.f32 %v66, %v82
    %v85 = vadd.f32 %v79, %v83
    %v86 = vadd.f32 %v80, %v84
    %v87 = vld [vmem:[#allocation7] sm:$0xff]
    %v88 = vmul.f32 %v63, %v65
    %v89 = vmul.f32 %v64, %v66
    %v90 = vadd.f32 %v88, %v89
    %v91 = vadd.f32 %v87, %v90
    %92 = vst [vmem:[#allocation7] sm:$0xff] %v91
    %s93 = scalar_lea.vmem [#allocation7], 8
    %v94 = vld [vmem:[%s93] sm:$0xff]
    %v95 = vadd.f32 %v63, %v65
    %v96 = vadd.f32 %v64, %v66
    %v97 = vadd.f32 %v95, %v96
    %v98 = vadd.f32 %v94, %v97
    %99 = vst [vmem:[%s93] sm:$0xff] %v98
    %s100 = scalar_lea.vmem [#allocation7], 16
    %v101 = vld [vmem:[%s100] sm:$0xff]
    %v102 = vadd.f32 %v85, %v86
    %v103 = vadd.f32 %v101, %v102
    %104 = vst [vmem:[%s100] sm:$0xff] %v103
    // Predicated region
    $region22: #{tpu_custom_call.1} parent=1 // pred_check
      _
    $region23: #{tpu_custom_call.1} parent=1 // pred_check_branch
      %106 = sbr.rel (0) target = $region25
    $region24: #{tpu_custom_call.1} parent=1 // pred_region
      %108 = vsyncadd [#allocation4], 0
      %s109 = sshll.u32 [#allocation7], 4
      %s110 = int_to_ptr.vmem [resolvable:$true] %s109
      %s111 = sshll.u32 %s2, 4
      %s112 = int_to_ptr.hbm [resolvable:$true] %s111
      %117 = dma.vmem_to_hbm [thread:$0]  %s110, 384, %s112, [#allocation4], 128, 128, 8
    $region25: #{tpu_custom_call.1} parent=1 // pred_fallthru
      _
    // Predicated region
    $region26: #{tpu_custom_call.1} parent=1 // pred_check
      _
    $region27: #{tpu_custom_call.1} parent=1 // pred_check_branch
      %119 = sbr.rel (0) target = $region29
    $region28: #{tpu_custom_call.1} parent=1 // pred_region
      %121 = dma.done [#allocation4], 384
    $region29: #{tpu_custom_call.1} parent=1 // pred_fallthru
      _
    %122 = vsyncpa [#allocation3], 1
    %123 = vsyncpa [#allocation6], 1
    %124 = vsyncpa [#allocation4], 1

</llo_original>
